<compile_context>
chip_gen: v5e
topology: v5e:2x2
jax: 0.10.0
libtpu: 0.0.40
codegen_flags: <defaults>
</compile_context>

<pallas_src>
import math

import jax
import jax.numpy as jnp
from jax import lax
from jax.experimental import pallas as pl
from jax.experimental.pallas import tpu as pltpu

CLAMP_MAX = math.log(1.0 / 0.01)   # torch.log(tensor(1/0.01)).item()
EPS = 1e-12                        # F.normalize default eps


def _round_up(a, m):
    return (a + m - 1) // m * m


def _vmem_capacity_bytes():
    """Physical VMEM per TensorCore; conservative fallback if the query fails."""
    try:
        cap = getattr(pltpu.get_tpu_info(), "vmem_capacity_bytes", None)
        if cap:
            return int(cap)
    except Exception:
        pass
    return 64 << 20   # v7x-class (smallest current part) -> conservative


# ----------------------------------------------------------------------------
# Main kernel: one grid step processes a (tm, model_dim) tile of tokens.
#   proj   = x_tile @ W + b                          (MXU, f32 accumulate)
#   proj_n = proj * rsqrt(max(sum(proj^2), eps^2))   (row L2-normalize, f32)
#   out    = proj_n @ sim_scaled                     (MXU, f32 accumulate)
# W / bias / sim_scaled are whole-array VMEM residents (single buffered).
# ----------------------------------------------------------------------------
def _cosine_gate_kernel(x_ref, w_ref, b_ref, sim_ref, out_ref):
    proj = jnp.dot(x_ref[...], w_ref[...], preferred_element_type=jnp.float32)
    proj = proj + b_ref[...]                      # bias already f32 (1, proj_dim)
    row_sumsq = jnp.sum(proj * proj, axis=1, keepdims=True)
    proj_n = proj * lax.rsqrt(jnp.maximum(row_sumsq, EPS * EPS))
    out_ref[...] = jnp.dot(proj_n.astype(sim_ref.dtype), sim_ref[...],
                           preferred_element_type=jnp.float32).astype(out_ref.dtype)


def cosine_topk_gate(x, w, b, sim_matrix, temperature, *, tm=None, mxu_dtype=None):
    """x: [N, model_dim], w: [model_dim, proj_dim] (transposed Linear weight),
    b: [proj_dim], sim_matrix: [proj_dim, E], temperature: shape [1].

    mxu_dtype: optional narrow MXU-feed dtype (e.g. jnp.bfloat16); accumulation
    and the L2-normalize stay in f32.  Default: keep x's dtype."""
    N, model_dim = x.shape
    proj_dim, E = sim_matrix.shape
    e_pad = _round_up(E, 128)                           # lane-dense expert axis

    compute_dtype = jnp.dtype(mxu_dtype) if mxu_dtype is not None else jnp.dtype(x.dtype)
    itemsize = compute_dtype.itemsize

    # ---- one-shot parameter prep in plain JAX (fuses pad+normalize+scale) ----
    sim32 = sim_matrix.astype(jnp.float32)
    col_norm = jnp.sqrt(jnp.sum(sim32 * sim32, axis=0, keepdims=True))
    scale = jnp.exp(jnp.minimum(temperature.astype(jnp.float32)[0], CLAMP_MAX))
    sim_scaled = (sim32 / jnp.maximum(col_norm, EPS)) * scale
    sim_scaled = jnp.pad(sim_scaled, ((0, 0), (0, e_pad - E))).astype(compute_dtype)

    x_c = x.astype(compute_dtype)
    w_c = w.astype(compute_dtype)
    b32 = b.astype(jnp.float32).reshape(1, proj_dim)

    # ---- generation-aware token-tile size ----
    vmem_phys = _vmem_capacity_bytes()
    small_vmem = vmem_phys <= (80 << 20)                # v7x-class (64 MiB / TC)
    x_db_target = (12 << 20) if small_vmem else (16 << 20)
    vmem_cap = max((vmem_phys - (16 << 20)) if small_vmem else (96 << 20), 32 << 20)

    if tm is None:
        tm = x_db_target // max(1, 2 * model_dim * itemsize)
        tm = max(128, min(1024, tm))
    tm = _round_up(tm, 128)                 # clean MXU M dim, covers any dtype sublane
    tm = min(tm, _round_up(N, 128))

    def _vmem_need(t):
        return (2 * t * model_dim * itemsize          # x tiles (double buffered)
                + 2 * t * e_pad * itemsize            # out tiles (double buffered)
                + model_dim * proj_dim * itemsize     # W resident (1x)
                + proj_dim * e_pad * itemsize         # sim resident (1x)
                + proj_dim * 4                        # bias resident (1x)
                + 3 * t * proj_dim * 4)               # f32 proj / proj_n / temps

    while tm > 128 and int(_vmem_need(tm) * 1.25) + (4 << 20) > vmem_cap:
        tm -= 128

    # v7x has 2 TensorCores: keep >=2 "parallel" grid steps when tokens allow it.
    if N > 128 and pl.cdiv(N, tm) < 2:
        tm = max(128, _round_up(pl.cdiv(N, 2), 128))

    num_tiles = pl.cdiv(N, tm)              # ragged last tile handled by Pallas
    vmem_limit = int(min(max(int(_vmem_need(tm) * 1.25) + (4 << 20), 32 << 20), vmem_cap))

    out = pl.pallas_call(
        _cosine_gate_kernel,
        out_shape=jax.ShapeDtypeStruct((N, e_pad), compute_dtype),
        grid=(num_tiles,),
        in_specs=[
            pl.BlockSpec((tm, model_dim), lambda i: (i, 0)),       # x tile (pipelined)
            pl.BlockSpec(memory_space=pltpu.MemorySpace.VMEM),     # W   (resident, 1x)
            pl.BlockSpec(memory_space=pltpu.MemorySpace.VMEM),     # b   (resident, 1x)
            pl.BlockSpec(memory_space=pltpu.MemorySpace.VMEM),     # sim (resident, 1x)
        ],
        out_specs=pl.BlockSpec((tm, e_pad), lambda i: (i, 0)),
        compiler_params=pltpu.CompilerParams(
            dimension_semantics=("parallel",),
            vmem_limit_bytes=vmem_limit,
        ),
    )(x_c, w_c, b32, sim_scaled)

    # TODO(synk): for very large model_dim on v7x, add a K ("arbitrary") grid axis
    # with a VMEM f32 accumulator instead of keeping W fully resident; optionally
    # fuse top-k so only (N, k) values/indices hit HBM instead of padded logits.
    return out[:, :E]


def reference(x, w, b, sim_matrix, temperature):
    prec = lax.Precision.HIGHEST
    proj = jnp.dot(x.astype(jnp.float32), w.astype(jnp.float32), precision=prec) + b
    proj_n = proj / jnp.maximum(jnp.linalg.norm(proj, axis=1, keepdims=True), EPS)
    sim32 = sim_matrix.astype(jnp.float32)
    sim_n = sim32 / jnp.maximum(jnp.linalg.norm(sim32, axis=0, keepdims=True), EPS)
    logits = jnp.dot(proj_n, sim_n, precision=prec)
    scale = jnp.exp(jnp.minimum(temperature[0], CLAMP_MAX))
    return logits * scale


if __name__ == "__main__":
    # Small shapes consistent with the module: tokens=8, model_dim=32,
    # proj_dim=256 (module default), num_global_experts=4.
    N, model_dim, proj_dim, num_experts = 8, 32, 256, 4
    init_t = 0.5

    key = jax.random.PRNGKey(0)
    kx, kw, kb, ks = jax.random.split(key, 4)

    x = jax.random.normal(kx, (N, model_dim), dtype=jnp.float32)
    # cosine_projector: Linear(model_dim, proj_dim); weight stored transposed
    # here as [model_dim, proj_dim] so the kernel computes x @ W + b directly.
    bound = 1.0 / math.sqrt(model_dim)
    w = jax.random.uniform(kw, (model_dim, proj_dim), minval=-bound, maxval=bound,
                           dtype=jnp.float32)
    b = jax.random.uniform(kb, (proj_dim,), minval=-bound, maxval=bound,
                           dtype=jnp.float32)
    sim_matrix = 0.01 * jax.random.normal(ks, (proj_dim, num_experts), dtype=jnp.float32)
    temperature = jnp.array([math.log(1.0 / init_t)], dtype=jnp.float32)

    gate = jax.jit(cosine_topk_gate, static_argnames=("tm", "mxu_dtype"))

    # f32 path (matches the torch module semantics).
    ref = reference(x, w, b, sim_matrix, temperature)
    out = jax.block_until_ready(gate(x, w, b, sim_matrix, temperature))
    assert out.shape == (N, num_experts)
    assert jnp.allclose(out, ref, atol=1e-5, rtol=1e-5), "f32 mismatch vs reference"

    # Ragged multi-tile path (N not a multiple of the token tile; no x padding).
    N2, md2 = 300, 64
    k2 = jax.random.split(key, 8)
    x2 = jax.random.normal(k2[4], (N2, md2), dtype=jnp.float32)
    bound2 = 1.0 / math.sqrt(md2)
    w2 = jax.random.uniform(k2[5], (md2, proj_dim), minval=-bound2, maxval=bound2,
                            dtype=jnp.float32)
    b2 = jax.random.uniform(k2[6], (proj_dim,), minval=-bound2, maxval=bound2,
                            dtype=jnp.float32)
    sim2 = 0.01 * jax.random.normal(k2[7], (proj_dim, num_experts), dtype=jnp.float32)
    ref2 = reference(x2, w2, b2, sim2, temperature)
    out2 = jax.block_until_ready(gate(x2, w2, b2, sim2, temperature, tm=128))
    assert out2.shape == (N2, num_experts)
    assert jnp.allclose(out2, ref2, atol=1e-5, rtol=1e-5), "ragged mismatch vs reference"

    # Optional bf16 MXU-feed path (perf mode; f32 accumulate retained).
    out_bf16 = jax.block_until_ready(
        gate(x, w, b, sim_matrix, temperature, mxu_dtype=jnp.bfloat16))
    assert out_bf16.shape == (N, num_experts)
    assert jnp.allclose(out_bf16.astype(jnp.float32), ref, atol=2e-2), "bf16 mismatch"

    print("KERNEL_OK")
</pallas_src>

<mosaic_0001>
module attributes {stable_mosaic.version = 11 : i64} {
  func.func @_cosine_gate_kernel(%arg0: i32, %arg1: memref<128x32xf32, #tpu.memory_space<vmem>>, %arg2: memref<32x256xf32, #tpu.memory_space<vmem>>, %arg3: memref<1x256xf32, #tpu.memory_space<vmem>>, %arg4: memref<256x128xf32, #tpu.memory_space<vmem>>, %arg5: memref<128x128xf32, #tpu.memory_space<vmem>>) attributes {dimension_semantics = [#tpu.dimension_semantics<parallel>], iteration_bounds = array<i64: 1>, scalar_prefetch = 0 : i64, scratch_operands = 0 : i64, tpu.core_type = #tpu.core_type<tc>, window_params = [{transform_indices = @transform_0, window_bounds = array<i64: 128, 32>}, {pipeline_mode = #tpu.pipeline_mode<synchronous>, transform_indices = @transform_1, window_bounds = array<i64: 32, 256>}, {pipeline_mode = #tpu.pipeline_mode<synchronous>, transform_indices = @transform_2, window_bounds = array<i64: 1, 256>}, {pipeline_mode = #tpu.pipeline_mode<synchronous>, transform_indices = @transform_3, window_bounds = array<i64: 256, 128>}, {transform_indices = @transform_4, window_bounds = array<i64: 128, 128>}]} {
    %c0 = arith.constant 0 : index
    %c0_0 = arith.constant 0 : index
    %0 = vector.load %arg1[%c0, %c0_0] : memref<128x32xf32, #tpu.memory_space<vmem>>, vector<128x32xf32>
    %c0_1 = arith.constant 0 : index
    %c0_2 = arith.constant 0 : index
    %1 = vector.load %arg2[%c0_1, %c0_2] : memref<32x256xf32, #tpu.memory_space<vmem>>, vector<32x256xf32>
    %cst = arith.constant dense<0.000000e+00> : vector<128x256xf32>
    %2 = tpu.matmul %0, %1, %cst {dimension_numbers = #tpu.dot_dimension_numbers<[1], [0], [0], [1], [0, 0, 1, 1], [], []>} : vector<128x32xf32>, vector<32x256xf32>, vector<128x256xf32> -> vector<128x256xf32>
    %c0_3 = arith.constant 0 : index
    %c0_4 = arith.constant 0 : index
    %3 = vector.load %arg3[%c0_3, %c0_4] : memref<1x256xf32, #tpu.memory_space<vmem>>, vector<1x256xf32>
    %4 = vector.broadcast %3 : vector<1x256xf32> to vector<128x256xf32>
    %5 = arith.addf %2, %4 : vector<128x256xf32>
    %6 = arith.mulf %5, %5 : vector<128x256xf32>
    %cst_5 = arith.constant dense<0.000000e+00> : vector<128xf32>
    %7 = vector.multi_reduction <add>, %6, %cst_5 [1] : vector<128x256xf32> to vector<128xf32>
    %8 = vector.shape_cast %7 : vector<128xf32> to vector<128x1xf32>
    %cst_6 = arith.constant 1.000000e-24 : f32
    %9 = vector.broadcast %cst_6 : f32 to vector<128x1xf32>
    %10 = arith.maximumf %8, %9 : vector<128x1xf32>
    %11 = math.rsqrt %10 : vector<128x1xf32>
    %12 = vector.broadcast %11 : vector<128x1xf32> to vector<128x256xf32>
    %13 = arith.mulf %5, %12 : vector<128x256xf32>
    %c0_7 = arith.constant 0 : index
    %c0_8 = arith.constant 0 : index
    %14 = vector.load %arg4[%c0_7, %c0_8] : memref<256x128xf32, #tpu.memory_space<vmem>>, vector<256x128xf32>
    %cst_9 = arith.constant dense<0.000000e+00> : vector<128x128xf32>
    %15 = tpu.matmul %13, %14, %cst_9 {dimension_numbers = #tpu.dot_dimension_numbers<[1], [0], [0], [1], [0, 0, 1, 1], [], []>} : vector<128x256xf32>, vector<256x128xf32>, vector<128x128xf32> -> vector<128x128xf32>
    %c0_10 = arith.constant 0 : index
    %c0_11 = arith.constant 0 : index
    %16 = vector.load %arg5[%c0_10, %c0_11] : memref<128x128xf32, #tpu.memory_space<vmem>>, vector<128x128xf32>
    tpu.vector_store %arg5[%c0_10, %c0_11], %15 {strides = array<i32>} : memref<128x128xf32, #tpu.memory_space<vmem>>, vector<128x128xf32>,
    return
  }
  func.func @transform_0(%arg0: i32) -> (i32, i32) {
    %c0_i32 = arith.constant 0 : i32
    %c0_i32_0 = arith.constant 0 : i32
    return %arg0, %c0_i32 : i32, i32
  }
  func.func @transform_1(%arg0: i32) -> (i32, i32) {
    %c0_i32 = arith.constant 0 : i32
    %c0_i32_0 = arith.constant 0 : i32
    %c0_i32_1 = arith.constant 0 : i32
    return %c0_i32, %c0_i32_0 : i32, i32
  }
  func.func @transform_2(%arg0: i32) -> (i32, i32) {
    %c0_i32 = arith.constant 0 : i32
    %c0_i32_0 = arith.constant 0 : i32
    %c0_i32_1 = arith.constant 0 : i32
    return %c0_i32, %c0_i32_0 : i32, i32
  }
  func.func @transform_3(%arg0: i32) -> (i32, i32) {
    %c0_i32 = arith.constant 0 : i32
    %c0_i32_0 = arith.constant 0 : i32
    %c0_i32_1 = arith.constant 0 : i32
    return %c0_i32, %c0_i32_0 : i32, i32
  }
  func.func @transform_4(%arg0: i32) -> (i32, i32) {
    %c0_i32 = arith.constant 0 : i32
    %c0_i32_0 = arith.constant 0 : i32
    return %arg0, %c0_i32 : i32, i32
  }
}

</mosaic_0001>

<llo_original>
// kernel: cosine_topk_gate.1
$region0: #{cosine_topk_gate.1}
  #allocation0 [shape = 'u32[]', space=smem, size = 0x4, offset = 0x4, fixed_abs, tag = 'smem constant byte address 0x4 - core index']
  #allocation1 [shape = 'u32[72,128]{1,0:T(1,128)}', space=vmem, size = 0x9000, scoped, tag = 'internal scratch']
  %s0 = inlined_call_operand.vmem [shape: f32[8,32], index: 0, kind: input, shape index: {}]
  %s1 = inlined_call_operand.vmem [shape: f32[32,256], index: 1, kind: input, shape index: {}]
  %s2 = inlined_call_operand.vmem [shape: f32[1,256], index: 2, kind: input, shape index: {}]
  %s3 = inlined_call_operand.vmem [shape: f32[256,128], index: 3, kind: input, shape index: {}]
  %s4 = inlined_call_operand.vmem [shape: f32[8,128], index: 4, kind: output, shape index: {}]
  %s5 = sld [smem:[#allocation0]]
  $region60: #{cosine_topk_gate.1} parent=0
    _
  %s7 = ssub.s32 1, %s5
  %s8 = scalar_select 0, %s7, %s5
  $region1: #{cosine_topk_gate.1} parent=0
    #allocation2 [shape = 'u8[65536]{0}', space=vmem, size = 0x10000, scoped, tag = 'output window, operand 0, single buffered']
    // Predicated region
    $region2: #{cosine_topk_gate.1} parent=1 // pred_check
      _
    $region3: #{cosine_topk_gate.1} parent=1 // pred_check_branch
      %10 = sbr.rel (0) target = $region5
    $region4: #{cosine_topk_gate.1} parent=1 // pred_region
      _
    $region5: #{cosine_topk_gate.1} parent=1 // pred_fallthru
      _
    // Predicated region
    $region6: #{cosine_topk_gate.1} parent=1 // pred_check
      _
    $region7: #{cosine_topk_gate.1} parent=1 // pred_check_branch
      %12 = sbr.rel (0) target = $region9
    $region8: #{cosine_topk_gate.1} parent=1 // pred_region
      _
    $region9: #{cosine_topk_gate.1} parent=1 // pred_fallthru
      _
    // Predicated region
    $region10: #{cosine_topk_gate.1} parent=1 // pred_check
      _
    $region11: #{cosine_topk_gate.1} parent=1 // pred_check_branch
      %14 = sbr.rel (0) target = $region13
    $region12: #{cosine_topk_gate.1} parent=1 // pred_region
      _
    $region13: #{cosine_topk_gate.1} parent=1 // pred_fallthru
      _
    // Predicated region
    $region14: #{cosine_topk_gate.1} parent=1 // pred_check
      _
    $region15: #{cosine_topk_gate.1} parent=1 // pred_check_branch
      %16 = sbr.rel (0) target = $region17
    $region16: #{cosine_topk_gate.1} parent=1 // pred_region
      _
    $region17: #{cosine_topk_gate.1} parent=1 // pred_fallthru
      _
    %v17 = vld [vmem:[%s0] sm:$0xff]
    %v18 = vld [vmem:[%s0 + $0x8] sm:$0xff]
    %v19 = vld [vmem:[%s0 + $0x10] sm:$0xff]
    %v20 = vld [vmem:[%s0 + $0x18] sm:$0xff]
    %v21 = vld [vmem:[%s0 + $0x20] sm:$0xff]
    %v22 = vld [vmem:[%s0 + $0x28] sm:$0xff]
    %v23 = vld [vmem:[%s0 + $0x30] sm:$0xff]
    %v24 = vld [vmem:[%s0 + $0x38] sm:$0xff]
    %v25 = vld [vmem:[%s0 + $0x40] sm:$0xff]
    %v26 = vld [vmem:[%s0 + $0x48] sm:$0xff]
    %v27 = vld [vmem:[%s0 + $0x50] sm:$0xff]
    %v28 = vld [vmem:[%s0 + $0x58] sm:$0xff]
    %v29 = vld [vmem:[%s0 + $0x60] sm:$0xff]
    %v30 = vld [vmem:[%s0 + $0x68] sm:$0xff]
    %v31 = vld [vmem:[%s0 + $0x70] sm:$0xff]
    %v32 = vld [vmem:[%s0 + $0x78] sm:$0xff]
    %v33 = vld [vmem:[%s1] sm:$0xff]
    %v34 = vld [vmem:[%s1 + $0x8] sm:$0xff]
    %v35 = vld [vmem:[%s1 + $0x10] sm:$0xff]
    %v36 = vld [vmem:[%s1 + $0x18] sm:$0xff]
    %v37 = vld [vmem:[%s1 + $0x20] sm:$0xff]
    %v38 = vld [vmem:[%s1 + $0x28] sm:$0xff]
    %v39 = vld [vmem:[%s1 + $0x30] sm:$0xff]
    %v40 = vld [vmem:[%s1 + $0x38] sm:$0xff]
    %v41 = vld [vmem:[%s2] sm:$0x3]
    %v43 = vperm.slane %v41, 0
    %v44 = vperm.slane %v41, 1
    %vm47 = vcmask 261120
    %v49 = vsel %vm47, %v17, 0
    %v52 = vsel %vm47, %v18, 0
    %v55 = vsel %vm47, %v19, 0
    %v58 = vsel %vm47, %v20, 0
    %v61 = vsel %vm47, %v21, 0
    %v64 = vsel %vm47, %v22, 0
    %v67 = vsel %vm47, %v23, 0
    %v70 = vsel %vm47, %v24, 0
    %v73 = vsel %vm47, %v25, 0
    %v76 = vsel %vm47, %v26, 0
    %v79 = vsel %vm47, %v27, 0
    %v82 = vsel %vm47, %v28, 0
    %v85 = vsel %vm47, %v29, 0
    %v88 = vsel %vm47, %v30, 0
    %v91 = vsel %vm47, %v31, 0
    %v94 = vsel %vm47, %v32, 0
    %96 = vmatpush.msra.mxu0 0.0
    %97 = vmatpush.msra.mxu0 0.0
    %98 = vmatpush.msra.mxu0 0.0
    %99 = vmatpush.msra.mxu0 0.0
    %100 = vmatpush.msra.mxu0 0.0
    %101 = vmatpush.msra.mxu0 0.0
    %102 = vmatpush.msra.mxu0 0.0
    %103 = vmatpush.msra.mxu0 0.0
    %104 = vmatpush.msra.mxu0 0.0
    %105 = vmatpush.msra.mxu0 0.0
    %106 = vmatpush.msra.mxu0 0.0
    %107 = vmatpush.msra.mxu0 0.0
    %108 = vmatpush.msra.mxu0 %v39
    %109 = vmatpush.msra.mxu0 %v37
    %110 = vmatpush.msra.mxu0 %v35
    %111 = vmatpush.msra.mxu0 %v33
    %112 = vmatmul.f32.gmra.mxu0 %v49
    %v113 = vpop.f32.mrf.mxu0
    %v114 = vadd.f32 %v43, %v113
    %115 = vmatmul.f32.gmra.mxu0 %v52
    %v116 = vpop.f32.mrf.mxu0
    %v117 = vadd.f32 %v43, %v116
    %118 = vmatmul.f32.gmra.mxu0 %v55
    %v119 = vpop.f32.mrf.mxu0
    %v120 = vadd.f32 %v43, %v119
    %121 = vmatmul.f32.gmra.mxu0 %v58
    %v122 = vpop.f32.mrf.mxu0
    %v123 = vadd.f32 %v43, %v122
    %124 = vmatmul.f32.gmra.mxu0 %v61
    %v125 = vpop.f32.mrf.mxu0
    %v126 = vadd.f32 %v43, %v125
    %127 = vmatmul.f32.gmra.mxu0 %v64
    %v128 = vpop.f32.mrf.mxu0
    %v129 = vadd.f32 %v43, %v128
    %130 = vmatmul.f32.gmra.mxu0 %v67
    %v131 = vpop.f32.mrf.mxu0
    %v132 = vadd.f32 %v43, %v131
    %133 = vmatmul.f32.gmra.mxu0 %v70
    %v134 = vpop.f32.mrf.mxu0
    %v135 = vadd.f32 %v43, %v134
    %136 = vmatmul.f32.gmra.mxu0 %v73
    %v137 = vpop.f32.mrf.mxu0
    %v138 = vadd.f32 %v43, %v137
    %139 = vmatmul.f32.gmra.mxu0 %v76
    %v140 = vpop.f32.mrf.mxu0
    %v141 = vadd.f32 %v43, %v140
    %142 = vmatmul.f32.gmra.mxu0 %v79
    %v143 = vpop.f32.mrf.mxu0
    %v144 = vadd.f32 %v43, %v143
    %145 = vmatmul.f32.gmra.mxu0 %v82
    %v146 = vpop.f32.mrf.mxu0
    %v147 = vadd.f32 %v43, %v146
    %148 = vmatmul.f32.gmra.mxu0 %v85
    %v149 = vpop.f32.mrf.mxu0
    %v150 = vadd.f32 %v43, %v149
    %151 = vmatmul.f32.gmra.mxu0 %v88
    %v152 = vpop.f32.mrf.mxu0
    %v153 = vadd.f32 %v43, %v152
    %154 = vmatmul.f32.gmra.mxu0 %v91
    %v155 = vpop.f32.mrf.mxu0
    %v156 = vadd.f32 %v43, %v155
    %157 = vmatmul.f32.gmra.mxu0 %v94
    %v158 = vpop.f32.mrf.mxu0
    %v159 = vadd.f32 %v43, %v158
    %160 = vdwg.mxu0
    %161 = vmatpush.msra.mxu0 0.0
    %162 = vmatpush.msra.mxu0 0.0
    %163 = vmatpush.msra.mxu0 0.0
    %164 = vmatpush.msra.mxu0 0.0
    %165 = vmatpush.msra.mxu0 0.0
    %166 = vmatpush.msra.mxu0 0.0
    %167 = vmatpush.msra.mxu0 0.0
    %168 = vmatpush.msra.mxu0 0.0
    %169 = vmatpush.msra.mxu0 0.0
    %170 = vmatpush.msra.mxu0 0.0
    %171 = vmatpush.msra.mxu0 0.0
    %172 = vmatpush.msra.mxu0 0.0
    %173 = vmatpush.msra.mxu0 %v40
    %174 = vmatpush.msra.mxu0 %v38
    %175 = vmatpush.msra.mxu0 %v36
    %176 = vmatpush.msra.mxu0 %v34
    %177 = vmatmul.f32.gmra.mxu0 %v49
    %v178 = vpop.f32.mrf.mxu0
    %v179 = vadd.f32 %v44, %v178
    %180 = vmatmul.f32.gmra.mxu0 %v52
    %v181 = vpop.f32.mrf.mxu0
    %v182 = vadd.f32 %v44, %v181
    %183 = vmatmul.f32.gmra.mxu0 %v55
    %v184 = vpop.f32.mrf.mxu0
    %v185 = vadd.f32 %v44, %v184
    %186 = vmatmul.f32.gmra.mxu0 %v58
    %v187 = vpop.f32.mrf.mxu0
    %v188 = vadd.f32 %v44, %v187
    %189 = vmatmul.f32.gmra.mxu0 %v61
    %v190 = vpop.f32.mrf.mxu0
    %v191 = vadd.f32 %v44, %v190
    %192 = vmatmul.f32.gmra.mxu0 %v64
    %v193 = vpop.f32.mrf.mxu0
    %v194 = vadd.f32 %v44, %v193
    %195 = vmatmul.f32.gmra.mxu0 %v67
    %v196 = vpop.f32.mrf.mxu0
    %v197 = vadd.f32 %v44, %v196
    %198 = vmatmul.f32.gmra.mxu0 %v70
    %v199 = vpop.f32.mrf.mxu0
    %v200 = vadd.f32 %v44, %v199
    %201 = vmatmul.f32.gmra.mxu0 %v73
    %v202 = vpop.f32.mrf.mxu0
    %v203 = vadd.f32 %v44, %v202
    %204 = vmatmul.f32.gmra.mxu0 %v76
    %v205 = vpop.f32.mrf.mxu0
    %v206 = vadd.f32 %v44, %v205
    %207 = vmatmul.f32.gmra.mxu0 %v79
    %v208 = vpop.f32.mrf.mxu0
    %v209 = vadd.f32 %v44, %v208
    %210 = vmatmul.f32.gmra.mxu0 %v82
    %v211 = vpop.f32.mrf.mxu0
    %v212 = vadd.f32 %v44, %v211
    %213 = vmatmul.f32.gmra.mxu0 %v85
    %v214 = vpop.f32.mrf.mxu0
    %v215 = vadd.f32 %v44, %v214
    %216 = vmatmul.f32.gmra.mxu0 %v88
    %v217 = vpop.f32.mrf.mxu0
    %v218 = vadd.f32 %v44, %v217
    %219 = vmatmul.f32.gmra.mxu0 %v91
    %v220 = vpop.f32.mrf.mxu0
    %v221 = vadd.f32 %v44, %v220
    %222 = vmatmul.f32.gmra.mxu0 %v94
    %v223 = vpop.f32.mrf.mxu0
    %v224 = vadd.f32 %v44, %v223
    %225 = vdwg.mxu0
    %v226 = vmul.f32 %v114, %v114
    %v227 = vmul.f32 %v179, %v179
    %v228 = vmul.f32 %v117, %v117
    %v229 = vmul.f32 %v182, %v182
    %v230 = vmul.f32 %v120, %v120
    %v231 = vmul.f32 %v185, %v185
    %v232 = vmul.f32 %v123, %v123
    %v233 = vmul.f32 %v188, %v188
    %v234 = vmul.f32 %v126, %v126
    %v235 = vmul.f32 %v191, %v191
    %v236 = vmul.f32 %v129, %v129
    %v237 = vmul.f32 %v194, %v194
    %v238 = vmul.f32 %v132, %v132
    %v239 = vmul.f32 %v197, %v197
    %v240 = vmul.f32 %v135, %v135
    %v241 = vmul.f32 %v200, %v200
    %v242 = vmul.f32 %v138, %v138
    %v243 = vmul.f32 %v203, %v203
    %v244 = vmul.f32 %v141, %v141
    %v245 = vmul.f32 %v206, %v206
    %v246 = vmul.f32 %v144, %v144
    %v247 = vmul.f32 %v209, %v209
    %v248 = vmul.f32 %v147, %v147
    %v249 = vmul.f32 %v212, %v212
    %v250 = vmul.f32 %v150, %v150
    %v251 = vmul.f32 %v215, %v215
    %v252 = vmul.f32 %v153, %v153
    %v253 = vmul.f32 %v218, %v218
    %v254 = vmul.f32 %v156, %v156
    %v255 = vmul.f32 %v221, %v221
    %v256 = vmul.f32 %v159, %v159
    %v257 = vmul.f32 %v224, %v224
    %v258 = vadd.f32 %v226, %v227
    %259 = vadd.xlane.f32.xlu0 %v258
    %v260 = vpop.xlane.xlu0 %259
    %v261 = vadd.f32 %v228, %v229
    %262 = vadd.xlane.f32.xlu0 %v261
    %v263 = vpop.xlane.xlu0 %262
    %v264 = vadd.f32 %v230, %v231
    %265 = vadd.xlane.f32.xlu0 %v264
    %v266 = vpop.xlane.xlu0 %265
    %v267 = vadd.f32 %v232, %v233
    %268 = vadd.xlane.f32.xlu0 %v267
    %v269 = vpop.xlane.xlu0 %268
    %v270 = vadd.f32 %v234, %v235
    %271 = vadd.xlane.f32.xlu0 %v270
    %v272 = vpop.xlane.xlu0 %271
    %v273 = vadd.f32 %v236, %v237
    %274 = vadd.xlane.f32.xlu0 %v273
    %v275 = vpop.xlane.xlu0 %274
    %v276 = vadd.f32 %v238, %v239
    %277 = vadd.xlane.f32.xlu0 %v276
    %v278 = vpop.xlane.xlu0 %277
    %v279 = vadd.f32 %v240, %v241
    %280 = vadd.xlane.f32.xlu0 %v279
    %v281 = vpop.xlane.xlu0 %280
    %v282 = vadd.f32 %v242, %v243
    %283 = vadd.xlane.f32.xlu0 %v282
    %v284 = vpop.xlane.xlu0 %283
    %v285 = vadd.f32 %v244, %v245
    %286 = vadd.xlane.f32.xlu0 %v285
    %v287 = vpop.xlane.xlu0 %286
    %v288 = vadd.f32 %v246, %v247
    %289 = vadd.xlane.f32.xlu0 %v288
    %v290 = vpop.xlane.xlu0 %289
    %v291 = vadd.f32 %v248, %v249
    %292 = vadd.xlane.f32.xlu0 %v291
    %v293 = vpop.xlane.xlu0 %292
    %v294 = vadd.f32 %v250, %v251
    %295 = vadd.xlane.f32.xlu0 %v294
    %v296 = vpop.xlane.xlu0 %295
    %v297 = vadd.f32 %v252, %v253
    %298 = vadd.xlane.f32.xlu0 %v297
    %v299 = vpop.xlane.xlu0 %298
    %v300 = vadd.f32 %v254, %v255
    %301 = vadd.xlane.f32.xlu0 %v300
    %v302 = vpop.xlane.xlu0 %301
    %v303 = vadd.f32 %v256, %v257
    %304 = vadd.xlane.f32.xlu0 %v303
    %v305 = vpop.xlane.xlu0 %304
    %v306 = vmax.f32 %v260, 1e-24
    %v307 = vmax.f32 %v263, 1e-24
    %v308 = vmax.f32 %v266, 1e-24
    %v309 = vmax.f32 %v269, 1e-24
    %v310 = vmax.f32 %v272, 1e-24
    %v311 = vmax.f32 %v275, 1e-24
    %v312 = vmax.f32 %v278, 1e-24
    %v313 = vmax.f32 %v281, 1e-24
    %v314 = vmax.f32 %v284, 1e-24
    %v315 = vmax.f32 %v287, 1e-24
    %v316 = vmax.f32 %v290, 1e-24
    %v317 = vmax.f32 %v293, 1e-24
    %v318 = vmax.f32 %v296, 1e-24
    %v319 = vmax.f32 %v299, 1e-24
    %v320 = vmax.f32 %v302, 1e-24
    %v321 = vmax.f32 %v305, 1e-24
    %v322 = vrsqrt.pop %v306
    %v323 = vmul.f32 %v322, %v306
    %v324 = vmul.f32 %v323, %v322
    %v325 = vmul.f32 0.5, %v324
    %v326 = vsub.f32 1.5, %v325
    %v327 = vmul.f32 %v322, %v326
    %vm328 = vweird.f32 %v306
    %vm329 = vweird.f32 %v322
    %vm330 = vmor %vm328, %vm329
    %v331 = vsel %vm330, %v322, %v327
    %v332 = vrsqrt.pop %v307
    %v333 = vmul.f32 %v332, %v307
    %v334 = vmul.f32 %v333, %v332
    %v335 = vmul.f32 0.5, %v334
    %v336 = vsub.f32 1.5, %v335
    %v337 = vmul.f32 %v332, %v336
    %vm338 = vweird.f32 %v307
    %vm339 = vweird.f32 %v332
    %vm340 = vmor %vm338, %vm339
    %v341 = vsel %vm340, %v332, %v337
    %v342 = vrsqrt.pop %v308
    %v343 = vmul.f32 %v342, %v308
    %v344 = vmul.f32 %v343, %v342
    %v345 = vmul.f32 0.5, %v344
    %v346 = vsub.f32 1.5, %v345
    %v347 = vmul.f32 %v342, %v346
    %vm348 = vweird.f32 %v308
    %vm349 = vweird.f32 %v342
    %vm350 = vmor %vm348, %vm349
    %v351 = vsel %vm350, %v342, %v347
    %v352 = vrsqrt.pop %v309
    %v353 = vmul.f32 %v352, %v309
    %v354 = vmul.f32 %v353, %v352
    %v355 = vmul.f32 0.5, %v354
    %v356 = vsub.f32 1.5, %v355
    %v357 = vmul.f32 %v352, %v356
    %vm358 = vweird.f32 %v309
    %vm359 = vweird.f32 %v352
    %vm360 = vmor %vm358, %vm359
    %v361 = vsel %vm360, %v352, %v357
    %v362 = vrsqrt.pop %v310
    %v363 = vmul.f32 %v362, %v310
    %v364 = vmul.f32 %v363, %v362
    %v365 = vmul.f32 0.5, %v364
    %v366 = vsub.f32 1.5, %v365
    %v367 = vmul.f32 %v362, %v366
    %vm368 = vweird.f32 %v310
    %vm369 = vweird.f32 %v362
    %vm370 = vmor %vm368, %vm369
    %v371 = vsel %vm370, %v362, %v367
    %v372 = vrsqrt.pop %v311
    %v373 = vmul.f32 %v372, %v311
    %v374 = vmul.f32 %v373, %v372
    %v375 = vmul.f32 0.5, %v374
    %v376 = vsub.f32 1.5, %v375
    %v377 = vmul.f32 %v372, %v376
    %vm378 = vweird.f32 %v311
    %vm379 = vweird.f32 %v372
    %vm380 = vmor %vm378, %vm379
    %v381 = vsel %vm380, %v372, %v377
    %v382 = vrsqrt.pop %v312
    %v383 = vmul.f32 %v382, %v312
    %v384 = vmul.f32 %v383, %v382
    %v385 = vmul.f32 0.5, %v384
    %v386 = vsub.f32 1.5, %v385
    %v387 = vmul.f32 %v382, %v386
    %vm388 = vweird.f32 %v312
    %vm389 = vweird.f32 %v382
    %vm390 = vmor %vm388, %vm389
    %v391 = vsel %vm390, %v382, %v387
    %v392 = vrsqrt.pop %v313
    %v393 = vmul.f32 %v392, %v313
    %v394 = vmul.f32 %v393, %v392
    %v395 = vmul.f32 0.5, %v394
    %v396 = vsub.f32 1.5, %v395
    %v397 = vmul.f32 %v392, %v396
    %vm398 = vweird.f32 %v313
    %vm399 = vweird.f32 %v392
    %vm400 = vmor %vm398, %vm399
    %v401 = vsel %vm400, %v392, %v397
    %v402 = vrsqrt.pop %v314
    %v403 = vmul.f32 %v402, %v314
    %v404 = vmul.f32 %v403, %v402
    %v405 = vmul.f32 0.5, %v404
    %v406 = vsub.f32 1.5, %v405
    %v407 = vmul.f32 %v402, %v406
    %vm408 = vweird.f32 %v314
    %vm409 = vweird.f32 %v402
    %vm410 = vmor %vm408, %vm409
    %v411 = vsel %vm410, %v402, %v407
    %v412 = vrsqrt.pop %v315
    %v413 = vmul.f32 %v412, %v315
    %v414 = vmul.f32 %v413, %v412
    %v415 = vmul.f32 0.5, %v414
    %v416 = vsub.f32 1.5, %v415
    %v417 = vmul.f32 %v412, %v416
    %vm418 = vweird.f32 %v315
    %vm419 = vweird.f32 %v412
    %vm420 = vmor %vm418, %vm419
    %v421 = vsel %vm420, %v412, %v417
    %v422 = vrsqrt.pop %v316
    %v423 = vmul.f32 %v422, %v316
    %v424 = vmul.f32 %v423, %v422
    %v425 = vmul.f32 0.5, %v424
    %v426 = vsub.f32 1.5, %v425
    %v427 = vmul.f32 %v422, %v426
    %vm428 = vweird.f32 %v316
    %vm429 = vweird.f32 %v422
    %vm430 = vmor %vm428, %vm429
    %v431 = vsel %vm430, %v422, %v427
    %v432 = vrsqrt.pop %v317
    %v433 = vmul.f32 %v432, %v317
    %v434 = vmul.f32 %v433, %v432
    %v435 = vmul.f32 0.5, %v434
    %v436 = vsub.f32 1.5, %v435
    %v437 = vmul.f32 %v432, %v436
    %vm438 = vweird.f32 %v317
    %vm439 = vweird.f32 %v432
    %vm440 = vmor %vm438, %vm439
    %v441 = vsel %vm440, %v432, %v437
    %v442 = vrsqrt.pop %v318
    %v443 = vmul.f32 %v442, %v318
    %v444 = vmul.f32 %v443, %v442
    %v445 = vmul.f32 0.5, %v444
    %v446 = vsub.f32 1.5, %v445
    %v447 = vmul.f32 %v442, %v446
    %vm448 = vweird.f32 %v318
    %vm449 = vweird.f32 %v442
    %vm450 = vmor %vm448, %vm449
    %v451 = vsel %vm450, %v442, %v447
    %v452 = vrsqrt.pop %v319
    %v453 = vmul.f32 %v452, %v319
    %v454 = vmul.f32 %v453, %v452
    %v455 = vmul.f32 0.5, %v454
    %v456 = vsub.f32 1.5, %v455
    %v457 = vmul.f32 %v452, %v456
    %vm458 = vweird.f32 %v319
    %vm459 = vweird.f32 %v452
    %vm460 = vmor %vm458, %vm459
    %v461 = vsel %vm460, %v452, %v457
    %v462 = vrsqrt.pop %v320
    %v463 = vmul.f32 %v462, %v320
    %v464 = vmul.f32 %v463, %v462
    %v465 = vmul.f32 0.5, %v464
    %v466 = vsub.f32 1.5, %v465
    %v467 = vmul.f32 %v462, %v466
    %vm468 = vweird.f32 %v320
    %vm469 = vweird.f32 %v462
    %vm470 = vmor %vm468, %vm469
    %v471 = vsel %vm470, %v462, %v467
    %v472 = vrsqrt.pop %v321
    %v473 = vmul.f32 %v472, %v321
    %v474 = vmul.f32 %v473, %v472
    %v475 = vmul.f32 0.5, %v474
    %v476 = vsub.f32 1.5, %v475
    %v477 = vmul.f32 %v472, %v476
    %vm478 = vweird.f32 %v321
    %vm479 = vweird.f32 %v472
    %vm480 = vmor %vm478, %vm479
    %v481 = vsel %vm480, %v472, %v477
    %v482 = vmul.f32 %v114, %v331
    %v483 = vmul.f32 %v179, %v331
    %v484 = vmul.f32 %v117, %v341
    %v485 = vmul.f32 %v182, %v341
    %v486 = vmul.f32 %v120, %v351
    %v487 = vmul.f32 %v185, %v351
    %v488 = vmul.f32 %v123, %v361
    %v489 = vmul.f32 %v188, %v361
    %v490 = vmul.f32 %v126, %v371
    %v491 = vmul.f32 %v191, %v371
    %v492 = vmul.f32 %v129, %v381
    %v493 = vmul.f32 %v194, %v381
    %v494 = vmul.f32 %v132, %v391
    %v495 = vmul.f32 %v197, %v391
    %v496 = vmul.f32 %v135, %v401
    %v497 = vmul.f32 %v200, %v401
    %v498 = vmul.f32 %v138, %v411
    %v499 = vmul.f32 %v203, %v411
    %v500 = vmul.f32 %v141, %v421
    %v501 = vmul.f32 %v206, %v421
    %v502 = vmul.f32 %v144, %v431
    %v503 = vmul.f32 %v209, %v431
    %v504 = vmul.f32 %v147, %v441
    %v505 = vmul.f32 %v212, %v441
    %v506 = vmul.f32 %v150, %v451
    %v507 = vmul.f32 %v215, %v451
    %v508 = vmul.f32 %v153, %v461
    %v509 = vmul.f32 %v218, %v461
    %v510 = vmul.f32 %v156, %v471
    %v511 = vmul.f32 %v221, %v471
    %v512 = vmul.f32 %v159, %v481
    %v513 = vmul.f32 %v224, %v481
    %v514 = vld [vmem:[%s3] sm:$0xff]
    %v515 = vld [vmem:[%s3 + $0x8] sm:$0xff]
    %v516 = vld [vmem:[%s3 + $0x10] sm:$0xff]
    %v517 = vld [vmem:[%s3 + $0x18] sm:$0xff]
    %v518 = vld [vmem:[%s3 + $0x20] sm:$0xff]
    %v519 = vld [vmem:[%s3 + $0x28] sm:$0xff]
    %v520 = vld [vmem:[%s3 + $0x30] sm:$0xff]
    %v521 = vld [vmem:[%s3 + $0x38] sm:$0xff]
    %v522 = vld [vmem:[%s3 + $0x40] sm:$0xff]
    %v523 = vld [vmem:[%s3 + $0x48] sm:$0xff]
    %v524 = vld [vmem:[%s3 + $0x50] sm:$0xff]
    %v525 = vld [vmem:[%s3 + $0x58] sm:$0xff]
    %v526 = vld [vmem:[%s3 + $0x60] sm:$0xff]
    %v527 = vld [vmem:[%s3 + $0x68] sm:$0xff]
    %v528 = vld [vmem:[%s3 + $0x70] sm:$0xff]
    %v529 = vld [vmem:[%s3 + $0x78] sm:$0xff]
    %v530 = vld [vmem:[%s3 + $0x80] sm:$0xff]
    %v531 = vld [vmem:[%s3 + $0x88] sm:$0xff]
    %v532 = vld [vmem:[%s3 + $0x90] sm:$0xff]
    %v533 = vld [vmem:[%s3 + $0x98] sm:$0xff]
    %v534 = vld [vmem:[%s3 + $0xa0] sm:$0xff]
    %v535 = vld [vmem:[%s3 + $0xa8] sm:$0xff]
    %v536 = vld [vmem:[%s3 + $0xb0] sm:$0xff]
    %v537 = vld [vmem:[%s3 + $0xb8] sm:$0xff]
    %v538 = vld [vmem:[%s3 + $0xc0] sm:$0xff]
    %v539 = vld [vmem:[%s3 + $0xc8] sm:$0xff]
    %v540 = vld [vmem:[%s3 + $0xd0] sm:$0xff]
    %v541 = vld [vmem:[%s3 + $0xd8] sm:$0xff]
    %v542 = vld [vmem:[%s3 + $0xe0] sm:$0xff]
    %v543 = vld [vmem:[%s3 + $0xe8] sm:$0xff]
    %v544 = vld [vmem:[%s3 + $0xf0] sm:$0xff]
    %v545 = vld [vmem:[%s3 + $0xf8] sm:$0xff]
    %546 = vmatpush.msra.mxu0 %v529
    %547 = vmatpush.msra.mxu0 %v528
    %548 = vmatpush.msra.mxu0 %v527
    %549 = vmatpush.msra.mxu0 %v526
    %550 = vmatpush.msra.mxu0 %v525
    %551 = vmatpush.msra.mxu0 %v524
    %552 = vmatpush.msra.mxu0 %v523
    %553 = vmatpush.msra.mxu0 %v522
    %554 = vmatpush.msra.mxu0 %v521
    %555 = vmatpush.msra.mxu0 %v520
    %556 = vmatpush.msra.mxu0 %v519
    %557 = vmatpush.msra.mxu0 %v518
    %558 = vmatpush.msra.mxu0 %v517
    %559 = vmatpush.msra.mxu0 %v516
    %560 = vmatpush.msra.mxu0 %v515
    %561 = vmatpush.msra.mxu0 %v514
    %562 = vmatmul.f32.gmra.mxu0 %v482
    %v563 = vpop.f32.mrf.mxu0
    %v564 = vadd.f32 0.0, %v563
    %565 = vmatmul.f32.gmra.mxu0 %v484
    %v566 = vpop.f32.mrf.mxu0
    %v567 = vadd.f32 0.0, %v566
    %568 = vmatmul.f32.gmra.mxu0 %v486
    %v569 = vpop.f32.mrf.mxu0
    %v570 = vadd.f32 0.0, %v569
    %571 = vmatmul.f32.gmra.mxu0 %v488
    %v572 = vpop.f32.mrf.mxu0
    %v573 = vadd.f32 0.0, %v572
    %574 = vmatmul.f32.gmra.mxu0 %v490
    %v575 = vpop.f32.mrf.mxu0
    %v576 = vadd.f32 0.0, %v575
    %577 = vmatmul.f32.gmra.mxu0 %v492
    %v578 = vpop.f32.mrf.mxu0
    %v579 = vadd.f32 0.0, %v578
    %580 = vmatmul.f32.gmra.mxu0 %v494
    %v581 = vpop.f32.mrf.mxu0
    %v582 = vadd.f32 0.0, %v581
    %583 = vmatmul.f32.gmra.mxu0 %v496
    %v584 = vpop.f32.mrf.mxu0
    %v585 = vadd.f32 0.0, %v584
    %586 = vmatmul.f32.gmra.mxu0 %v498
    %v587 = vpop.f32.mrf.mxu0
    %v588 = vadd.f32 0.0, %v587
    %589 = vmatmul.f32.gmra.mxu0 %v500
    %v590 = vpop.f32.mrf.mxu0
    %v591 = vadd.f32 0.0, %v590
    %592 = vmatmul.f32.gmra.mxu0 %v502
    %v593 = vpop.f32.mrf.mxu0
    %v594 = vadd.f32 0.0, %v593
    %595 = vmatmul.f32.gmra.mxu0 %v504
    %v596 = vpop.f32.mrf.mxu0
    %v597 = vadd.f32 0.0, %v596
    %598 = vmatmul.f32.gmra.mxu0 %v506
    %v599 = vpop.f32.mrf.mxu0
    %v600 = vadd.f32 0.0, %v599
    %601 = vmatmul.f32.gmra.mxu0 %v508
    %v602 = vpop.f32.mrf.mxu0
    %v603 = vadd.f32 0.0, %v602
    %604 = vmatmul.f32.gmra.mxu0 %v510
    %v605 = vpop.f32.mrf.mxu0
    %v606 = vadd.f32 0.0, %v605
    %607 = vmatmul.f32.gmra.mxu0 %v512
    %v608 = vpop.f32.mrf.mxu0
    %v609 = vadd.f32 0.0, %v608
    %610 = vdwg.mxu0
    %611 = vmatpush.msra.mxu0 %v545
    %612 = vmatpush.msra.mxu0 %v544
    %613 = vmatpush.msra.mxu0 %v543
    %614 = vmatpush.msra.mxu0 %v542
    %615 = vmatpush.msra.mxu0 %v541
    %616 = vmatpush.msra.mxu0 %v540
    %617 = vmatpush.msra.mxu0 %v539
    %618 = vmatpush.msra.mxu0 %v538
    %619 = vmatpush.msra.mxu0 %v537
    %620 = vmatpush.msra.mxu0 %v536
    %621 = vmatpush.msra.mxu0 %v535
    %622 = vmatpush.msra.mxu0 %v534
    %623 = vmatpush.msra.mxu0 %v533
    %624 = vmatpush.msra.mxu0 %v532
    %625 = vmatpush.msra.mxu0 %v531
    %626 = vmatpush.msra.mxu0 %v530
    %627 = vmatmul.f32.gmra.mxu0 %v483
    %v628 = vpop.f32.mrf.mxu0
    %v629 = vadd.f32 %v564, %v628
    %630 = vmatmul.f32.gmra.mxu0 %v485
    %v631 = vpop.f32.mrf.mxu0
    %v632 = vadd.f32 %v567, %v631
    %633 = vmatmul.f32.gmra.mxu0 %v487
    %v634 = vpop.f32.mrf.mxu0
    %v635 = vadd.f32 %v570, %v634
    %636 = vmatmul.f32.gmra.mxu0 %v489
    %v637 = vpop.f32.mrf.mxu0
    %v638 = vadd.f32 %v573, %v637
    %639 = vmatmul.f32.gmra.mxu0 %v491
    %v640 = vpop.f32.mrf.mxu0
    %v641 = vadd.f32 %v576, %v640
    %642 = vmatmul.f32.gmra.mxu0 %v493
    %v643 = vpop.f32.mrf.mxu0
    %v644 = vadd.f32 %v579, %v643
    %645 = vmatmul.f32.gmra.mxu0 %v495
    %v646 = vpop.f32.mrf.mxu0
    %v647 = vadd.f32 %v582, %v646
    %648 = vmatmul.f32.gmra.mxu0 %v497
    %v649 = vpop.f32.mrf.mxu0
    %v650 = vadd.f32 %v585, %v649
    %651 = vmatmul.f32.gmra.mxu0 %v499
    %v652 = vpop.f32.mrf.mxu0
    %v653 = vadd.f32 %v588, %v652
    %654 = vmatmul.f32.gmra.mxu0 %v501
    %v655 = vpop.f32.mrf.mxu0
    %v656 = vadd.f32 %v591, %v655
    %657 = vmatmul.f32.gmra.mxu0 %v503
    %v658 = vpop.f32.mrf.mxu0
    %v659 = vadd.f32 %v594, %v658
    %660 = vmatmul.f32.gmra.mxu0 %v505
    %v661 = vpop.f32.mrf.mxu0
    %v662 = vadd.f32 %v597, %v661
    %663 = vmatmul.f32.gmra.mxu0 %v507
    %v664 = vpop.f32.mrf.mxu0
    %v665 = vadd.f32 %v600, %v664
    %666 = vmatmul.f32.gmra.mxu0 %v509
    %v667 = vpop.f32.mrf.mxu0
    %v668 = vadd.f32 %v603, %v667
    %669 = vmatmul.f32.gmra.mxu0 %v511
    %v670 = vpop.f32.mrf.mxu0
    %v671 = vadd.f32 %v606, %v670
    %672 = vmatmul.f32.gmra.mxu0 %v513
    %v673 = vpop.f32.mrf.mxu0
    %v674 = vadd.f32 %v609, %v673
    %675 = vdwg.mxu0
    %676 = vst [vmem:[#allocation2] sm:$0xff] %v629
    %677 = vst [vmem:[#allocation2 + $0x8] sm:$0xff] %v632
    %678 = vst [vmem:[#allocation2 + $0x10] sm:$0xff] %v635
    %679 = vst [vmem:[#allocation2 + $0x18] sm:$0xff] %v638
    %680 = vst [vmem:[#allocation2 + $0x20] sm:$0xff] %v641
    %681 = vst [vmem:[#allocation2 + $0x28] sm:$0xff] %v644
    %682 = vst [vmem:[#allocation2 + $0x30] sm:$0xff] %v647
    %683 = vst [vmem:[#allocation2 + $0x38] sm:$0xff] %v650
    %684 = vst [vmem:[#allocation2 + $0x40] sm:$0xff] %v653
    %685 = vst [vmem:[#allocation2 + $0x48] sm:$0xff] %v656
    %686 = vst [vmem:[#allocation2 + $0x50] sm:$0xff] %v659
    %687 = vst [vmem:[#allocation2 + $0x58] sm:$0xff] %v662
    %688 = vst [vmem:[#allocation2 + $0x60] sm:$0xff] %v665
    %689 = vst [vmem:[#allocation2 + $0x68] sm:$0xff] %v668
    %690 = vst [vmem:[#allocation2 + $0x70] sm:$0xff] %v671
    %691 = vst [vmem:[#allocation2 + $0x78] sm:$0xff] %v674
    // Predicated region
    $region18: #{cosine_topk_gate.1} parent=1 // pred_check
      _
    $region19: #{cosine_topk_gate.1} parent=1 // pred_check_branch
      %693 = sbr.rel (0) target = $region21
    $region20: #{cosine_topk_gate.1} parent=1 // pred_region
      // Predicated region
      $region22: #{cosine_topk_gate.1} parent=20 // pred_check
        _
      $region23: #{cosine_topk_gate.1} parent=20 // pred_check_branch
        %695 = sbr.rel (0) target = $region25
      $region24: #{cosine_topk_gate.1} parent=20 // pred_region
        // Predicated region
        $region26: #{cosine_topk_gate.1} parent=24 // pred_check
          _
        $region27: #{cosine_topk_gate.1} parent=24 // pred_check_branch
          %697 = sbr.rel (0) target = $region29
        $region28: #{cosine_topk_gate.1} parent=24 // pred_region
          // Predicated region
          $region41: #{cosine_topk_gate.1} parent=28 // pred_check
            _
          $region42: #{cosine_topk_gate.1} parent=28 // pred_check_branch
            %713 = sbr.rel (0) target = $region44
          $region43: #{cosine_topk_gate.1} parent=28 // pred_region
            loop: start=0, step=1, limit=1
            $region45: #{cosine_topk_gate.1} parent=43 // loop_pre_header
              _
            $region46: #{cosine_topk_gate.1} parent=43 // loop_header
              %s715 = sphi 0, %s719
              %p716 = scmp.ge.s32.totalorder %s715, 1
              %s720 = sphi [#allocation2], [#allocation2]
              %s721 = sphi %s4, %s4
            $region47: #{cosine_topk_gate.1} parent=43 // loop_header_branch
              %718 = sbr.rel (%p716) target = $region51
            $region48: #{cosine_topk_gate.1} parent=43 // loop_body
              %v722 = vld [vmem:[%s720] sm:$0xff]
              %723 = vst [vmem:[%s721] sm:$0xff] %v722
            $region49: #{cosine_topk_gate.1} parent=43 // loop_footer
              %s719 = sadd.s32 1, %s715
            $region50: #{cosine_topk_gate.1} parent=43 // loop_footer_branch
              %714 = sbr.rel target = $region46
            $region51: #{cosine_topk_gate.1} parent=43 // loop_exit
              _
          $region44: #{cosine_topk_gate.1} parent=28 // pred_fallthru
            _
          // Predicated region
          $region52: #{cosine_topk_gate.1} parent=28 // pred_check
            _
          $region53: #{cosine_topk_gate.1} parent=28 // pred_check_branch
            %725 = sbr.rel target = $region55
          $region54: #{cosine_topk_gate.1} parent=28 // pred_region
            _
          $region55: #{cosine_topk_gate.1} parent=28 // pred_fallthru
            _
        $region29: #{cosine_topk_gate.1} parent=24 // pred_fallthru
          _
        // Predicated region
        $region30: #{cosine_topk_gate.1} parent=24 // pred_check
          _
        $region31: #{cosine_topk_gate.1} parent=24 // pred_check_branch
          %699 = sbr.rel target = $region33
        $region32: #{cosine_topk_gate.1} parent=24 // pred_region
          %s701 = ssub.s32 256, 1
          loop: start=0, step=1, limit=1
          $region34: #{cosine_topk_gate.1} parent=32 // loop_pre_header
            _
          $region35: #{cosine_topk_gate.1} parent=32 // loop_header
            %s703 = sphi 0, %s707
            %p704 = scmp.ge.s32.totalorder %s703, 1
            %s708 = sphi [#allocation2], [#allocation2]
            %s709 = sphi %s4, %s4
          $region36: #{cosine_topk_gate.1} parent=32 // loop_header_branch
            %706 = sbr.rel (%p704) target = $region40
          $region37: #{cosine_topk_gate.1} parent=32 // loop_body
            %v710 = vld [vmem:[%s708] sm:%s701]
            %711 = vst [vmem:[%s709] sm:%s701] %v710
          $region38: #{cosine_topk_gate.1} parent=32 // loop_footer
            %s707 = sadd.s32 1, %s703
          $region39: #{cosine_topk_gate.1} parent=32 // loop_footer_branch
            %702 = sbr.rel target = $region35
          $region40: #{cosine_topk_gate.1} parent=32 // loop_exit
            _
        $region33: #{cosine_topk_gate.1} parent=24 // pred_fallthru
          _
      $region25: #{cosine_topk_gate.1} parent=20 // pred_fallthru
        _
      %726 = vnop
    $region21: #{cosine_topk_gate.1} parent=1 // pred_fallthru
      _
    // Predicated region
    $region56: #{cosine_topk_gate.1} parent=1 // pred_check
      _
    $region57: #{cosine_topk_gate.1} parent=1 // pred_check_branch
      %728 = sbr.rel (0) target = $region59
    $region58: #{cosine_topk_gate.1} parent=1 // pred_region
      _
    $region59: #{cosine_topk_gate.1} parent=1 // pred_fallthru
      _

</llo_original>
